<compile_context>
chip_gen: v5e
topology: v5e:2x2
jax: 0.10.0
libtpu: 0.0.40
codegen_flags: <defaults>
</compile_context>

<pallas_src>
import functools

import jax
import jax.numpy as jnp
from jax import lax
from jax.experimental import pallas as pl
from jax.experimental.pallas import tpu as pltpu

EPS = 1e-8          # torch.nn.CosineSimilarity default
LANE = 128          # lane width for the lane-dense output slab


def _cdiv(a, b):
    return -(-a // b)


def _choose_tiles(B, S, D, itemsize, target_block_bytes):
    """Pick (TB, TS) for a (TB, TS, D) input block of ~target_block_bytes."""
    # Sublane-pack multiple for the second-to-last block dim (TS):
    # 8 rows/vreg for f32, 16 for bf16, 32 for int8/fp8.
    pack = max(8, 32 // itemsize)
    # The leading block dim has no (8,128) constraint.  Keep >= 2 B blocks
    # when B > 1 (v7x megacore sharding) and never read padded batch rows.
    TB = 1 if B <= 1 else min(8, _cdiv(B, 2))
    per_row = TB * D * itemsize
    ts_budget = max(pack, (target_block_bytes // per_row) // pack * pack)
    if ts_budget >= S:
        TS = S          # single S block; block dim == full array dim is legal
    else:
        TS = ts_budget  # multiple of `pack`; ragged tail is masked in-kernel
    return TB, TS


def match_kernel(jdb_ref, u_ref, out_ref, acc_ref, *,
                 inv_s, eps, seq_len, ts, mask_s_tail):
    """Fused mean-pool (over S) + cosine similarity against a unit vector.

    jdb_ref : (TB, TS, D)    block of last_hidden_state (bf16 or f32)
    u_ref   : (1, D)         unit-normalized enc_res = Linear(pooler_output)
    out_ref : (1, TB, LANE)  cosine similarity broadcast across lanes
    acc_ref : (TB, D) f32    running sum over the sequence axis
    """
    k = pl.program_id(1)
    last = pl.num_programs(1) - 1

    @pl.when(k == 0)
    def _init():
        acc_ref[...] = jnp.zeros_like(acc_ref)

    # f32 accumulation of the (possibly bf16) block, reduced over the seq axis.
    # NOTE(v7x): if the bf16->f32 cast + add ever binds on the VPU at large
    # blocks, route this reduction through the MXU (contract TS against a
    # ones vector with lax.dot_general, preferred_element_type=float32).
    if mask_s_tail:
        @pl.when(k < last)
        def _full_block():
            acc_ref[...] += jnp.sum(jdb_ref[...], axis=1, dtype=jnp.float32)

        @pl.when(k == last)
        def _tail_block():
            # Zero out sequence positions past the true length (masking only
            # runs on the single tail block, so it is effectively free).
            pos = k * ts + lax.broadcasted_iota(jnp.int32, (1, ts, 1), 1)
            x = jnp.where(pos < seq_len, jdb_ref[...], jnp.zeros_like(jdb_ref))
            acc_ref[...] += jnp.sum(x, axis=1, dtype=jnp.float32)
    else:
        acc_ref[...] += jnp.sum(jdb_ref[...], axis=1, dtype=jnp.float32)

    @pl.when(k == last)
    def _finalize():
        mean = acc_ref[...] * inv_s                                   # (TB, D)
        dot = jnp.sum(mean * u_ref[...], axis=-1, keepdims=True)      # (TB, 1)
        ssq = jnp.sum(mean * mean, axis=-1, keepdims=True)            # (TB, 1)
        # 1 / max(||mean||, eps)  ==  rsqrt(max(||mean||^2, eps^2))  (EUP slot)
        inv_n = lax.rsqrt(jnp.maximum(ssq, eps * eps))
        cos = dot * inv_n                                             # (TB, 1)
        out_ref[...] = jnp.broadcast_to(cos[None], out_ref.shape)     # unmasked vst


def match_model_forward(jdb_hidden, res_pooled, w_t, b, *, eps=EPS,
                        target_block_bytes=8 << 20):
    """jdb_hidden: (B, S, D); res_pooled: (1, H); w_t: (H, D); b: (D,) -> (B,).

    jdb_hidden is consumed in whatever dtype it already has in HBM (bf16 or
    f32); do NOT insert a separate cast pass in front of this kernel — that
    would cost a full extra HBM round-trip.
    """
    B, S, D = jdb_hidden.shape

    # --- Hoisted LazyLinear(512) + its norm (degenerate 1-row matmul, plain XLA)
    enc_res = res_pooled.astype(jnp.float32) @ w_t.astype(jnp.float32) \
        + b.astype(jnp.float32).reshape(1, -1)                          # (1, D)
    res_norm = jnp.maximum(jnp.sqrt(jnp.sum(enc_res * enc_res)), eps)
    u = enc_res / res_norm                                              # (1, D) unit

    # --- Tiling over B (parallel) and S (reduction, last grid axis); no padding.
    itemsize = jnp.dtype(jdb_hidden.dtype).itemsize
    target_block_bytes = min(int(target_block_bytes), 16 << 20)
    TB, TS = _choose_tiles(B, S, D, itemsize, target_block_bytes)
    NB = _cdiv(B, TB)
    NS = _cdiv(S, TS)
    mask_s_tail = (NS > 1) and (S % TS != 0)

    kernel = functools.partial(match_kernel, inv_s=1.0 / S, eps=eps,
                               seq_len=S, ts=TS, mask_s_tail=mask_s_tail)

    # VMEM budget: pipeline buffers for the input block + resident u + output +
    # accumulator, with headroom; capped at 48 MiB (fits v7x's 64 MiB VMEM,
    # conservative on v5e/v6e's 128 MiB).
    block_bytes = TB * TS * D * itemsize
    aux_bytes = (TB * D * 4) + 2 * (D * 4) + 2 * (TB * LANE * 4)
    vmem_limit = int(min(max(3 * block_bytes + aux_bytes + (4 << 20),
                             16 << 20), 48 << 20))

    out = pl.pallas_call(
        kernel,
        out_shape=jax.ShapeDtypeStruct((NB, TB, LANE), jnp.float32),
        grid_spec=pltpu.PrefetchScalarGridSpec(
            num_scalar_prefetch=0,
            grid=(NB, NS),
            in_specs=[
                pl.BlockSpec((TB, TS, D), lambda i, k: (i, k, 0)),  # jdb block
                pl.BlockSpec((1, D), lambda i, k: (0, 0)),          # resident u
            ],
            out_specs=pl.BlockSpec((1, TB, LANE), lambda i, k: (i, 0, 0)),
            scratch_shapes=[pltpu.VMEM((TB, D), jnp.float32)],
        ),
        compiler_params=pltpu.CompilerParams(
            dimension_semantics=("parallel", "arbitrary"),
            vmem_limit_bytes=vmem_limit,
        ),
    )(jdb_hidden, u)

    return out.reshape(NB * TB, LANE)[:B, 0]  # (B,)


def reference_forward(jdb_hidden, res_pooled, w_t, b, eps=EPS):
    enc_jdb = jnp.mean(jdb_hidden.astype(jnp.float32), axis=1)
    enc_res = res_pooled.astype(jnp.float32) @ w_t.astype(jnp.float32) \
        + b.astype(jnp.float32)
    dot = jnp.sum(enc_jdb * enc_res, axis=-1)
    n1 = jnp.linalg.norm(enc_jdb, axis=-1)
    n2 = jnp.linalg.norm(enc_res, axis=-1)
    return dot / (jnp.maximum(n1, eps) * jnp.maximum(n2, eps))


if __name__ == "__main__":
    key = jax.random.PRNGKey(0)

    # --- Test 1: small shapes, single S block, 2 parallel B blocks -----------
    B, S, D, H = 2, 8, 512, 256
    k1, k2, k3, k4 = jax.random.split(key, 4)
    jdb_hidden = jax.random.normal(k1, (B, S, D), jnp.float32).astype(jnp.bfloat16)
    res_pooled = jax.random.normal(k2, (1, H), jnp.float32)
    w_t = jax.random.normal(k3, (H, D), jnp.float32) / jnp.sqrt(H)
    b = jax.random.normal(k4, (D,), jnp.float32) * 0.01

    sim = match_model_forward(jdb_hidden, res_pooled, w_t, b)
    jax.block_until_ready(sim)
    ref = reference_forward(jdb_hidden, res_pooled, w_t, b)
    assert sim.shape == (B,)
    assert jnp.allclose(sim, ref, atol=1e-4, rtol=1e-4), (sim, ref)

    # --- Test 2: ragged B and S tails + multi-step S reduction (exercises the
    # in-kernel tail masking, accumulator init/finalize, partial B block) -----
    B2, S2, D2, H2 = 3, 20, 256, 128
    k5, k6, k7, k8 = jax.random.split(jax.random.PRNGKey(1), 4)
    jdb2 = jax.random.normal(k5, (B2, S2, D2), jnp.float32).astype(jnp.bfloat16)
    res2 = jax.random.normal(k6, (1, H2), jnp.float32)
    w2 = jax.random.normal(k7, (H2, D2), jnp.float32) / jnp.sqrt(H2)
    b2 = jax.random.normal(k8, (D2,), jnp.float32) * 0.01

    sim2 = match_model_forward(jdb2, res2, w2, b2,
                               target_block_bytes=8 * 1024)  # force TS < S
    jax.block_until_ready(sim2)
    ref2 = reference_forward(jdb2, res2, w2, b2)
    assert sim2.shape == (B2,)
    assert jnp.allclose(sim2, ref2, atol=1e-4, rtol=1e-4), (sim2, ref2)

    # --- Test 3: f32 input, multi-block B with ragged tail, exact S split ----
    B3, S3, D3, H3 = 5, 48, 256, 64
    k9, k10, k11, k12 = jax.random.split(jax.random.PRNGKey(2), 4)
    jdb3 = jax.random.normal(k9, (B3, S3, D3), jnp.float32)
    res3 = jax.random.normal(k10, (1, H3), jnp.float32)
    w3 = jax.random.normal(k11, (H3, D3), jnp.float32) / jnp.sqrt(H3)
    b3 = jax.random.normal(k12, (D3,), jnp.float32) * 0.01

    sim3 = match_model_forward(jdb3, res3, w3, b3,
                               target_block_bytes=16 * 1024)
    jax.block_until_ready(sim3)
    ref3 = reference_forward(jdb3, res3, w3, b3)
    assert sim3.shape == (B3,)
    assert jnp.allclose(sim3, ref3, atol=1e-4, rtol=1e-4), (sim3, ref3)

    print("KERNEL_OK")
</pallas_src>

<mosaic_0001>
module attributes {stable_mosaic.version = 11 : i64} {
  func.func @match_kernel(%arg0: i32, %arg1: i32, %arg2: memref<1x8x512xbf16, #tpu.memory_space<vmem>>, %arg3: memref<1x512xf32, #tpu.memory_space<vmem>>, %arg4: memref<1x1x128xf32, #tpu.memory_space<vmem>>, %arg5: memref<1x512xf32, #tpu.memory_space<vmem>>) attributes {dimension_semantics = [#tpu.dimension_semantics<parallel>, #tpu.dimension_semantics<arbitrary>], iteration_bounds = array<i64: 2, 1>, scalar_prefetch = 0 : i64, scratch_operands = 1 : i64, tpu.core_type = #tpu.core_type<tc>, window_params = [{transform_indices = @transform_0, window_bounds = array<i64: 1, 8, 512>}, {pipeline_mode = #tpu.pipeline_mode<synchronous>, transform_indices = @transform_1, window_bounds = array<i64: 1, 512>}, {transform_indices = @transform_2, window_bounds = array<i64: 1, 1, 128>}]} {
    %c0_i32 = arith.constant 0 : i32
    %0 = arith.cmpi eq, %arg1, %c0_i32 : i32
    %1 = arith.extui %0 : i1 to i32
    %c0_i32_0 = arith.constant 0 : i32
    %2 = arith.cmpi ne, %1, %c0_i32_0 : i32
    scf.if %2 {
      %cst_9 = arith.constant 0.000000e+00 : f32
      %12 = vector.broadcast %cst_9 : f32 to vector<1x512xf32>
      %c0_10 = arith.constant 0 : index
      %c0_11 = arith.constant 0 : index
      %13 = vector.load %arg5[%c0_10, %c0_11] : memref<1x512xf32, #tpu.memory_space<vmem>>, vector<1x512xf32>
      tpu.vector_store %arg5[%c0_10, %c0_11], %12 {strides = array<i32>} : memref<1x512xf32, #tpu.memory_space<vmem>>, vector<1x512xf32>,
    } else {
    }
    %c0 = arith.constant 0 : index
    %c0_1 = arith.constant 0 : index
    %3 = vector.load %arg5[%c0, %c0_1] : memref<1x512xf32, #tpu.memory_space<vmem>>, vector<1x512xf32>
    %c0_2 = arith.constant 0 : index
    %c0_3 = arith.constant 0 : index
    %c0_4 = arith.constant 0 : index
    %4 = vector.load %arg2[%c0_2, %c0_3, %c0_4] : memref<1x8x512xbf16, #tpu.memory_space<vmem>>, vector<1x8x512xbf16>
    %5 = arith.extf %4 : vector<1x8x512xbf16> to vector<1x8x512xf32>
    %cst = arith.constant dense<0.000000e+00> : vector<1x512xf32>
    %6 = vector.multi_reduction <add>, %5, %cst [1] : vector<1x8x512xf32> to vector<1x512xf32>
    %7 = arith.addf %3, %6 : vector<1x512xf32>
    %c0_5 = arith.constant 0 : index
    %c0_6 = arith.constant 0 : index
    %8 = vector.load %arg5[%c0_5, %c0_6] : memref<1x512xf32, #tpu.memory_space<vmem>>, vector<1x512xf32>
    tpu.vector_store %arg5[%c0_5, %c0_6], %7 {strides = array<i32>} : memref<1x512xf32, #tpu.memory_space<vmem>>, vector<1x512xf32>,
    %c0_i32_7 = arith.constant 0 : i32
    %9 = arith.cmpi eq, %arg1, %c0_i32_7 : i32
    %10 = arith.extui %9 : i1 to i32
    %c0_i32_8 = arith.constant 0 : i32
    %11 = arith.cmpi ne, %10, %c0_i32_8 : i32
    scf.if %11 {
      %c0_9 = arith.constant 0 : index
      %c0_10 = arith.constant 0 : index
      %12 = vector.load %arg5[%c0_9, %c0_10] : memref<1x512xf32, #tpu.memory_space<vmem>>, vector<1x512xf32>
      %cst_11 = arith.constant 1.250000e-01 : f32
      %13 = vector.broadcast %cst_11 : f32 to vector<1x512xf32>
      %14 = arith.mulf %12, %13 : vector<1x512xf32>
      %c0_12 = arith.constant 0 : index
      %c0_13 = arith.constant 0 : index
      %15 = vector.load %arg3[%c0_12, %c0_13] : memref<1x512xf32, #tpu.memory_space<vmem>>, vector<1x512xf32>
      %16 = arith.mulf %14, %15 : vector<1x512xf32>
      %cst_14 = arith.constant dense<0.000000e+00> : vector<1xf32>
      %17 = vector.multi_reduction <add>, %16, %cst_14 [1] : vector<1x512xf32> to vector<1xf32>
      %18 = vector.shape_cast %17 : vector<1xf32> to vector<1x1xf32>
      %19 = arith.mulf %14, %14 : vector<1x512xf32>
      %cst_15 = arith.constant dense<0.000000e+00> : vector<1xf32>
      %20 = vector.multi_reduction <add>, %19, %cst_15 [1] : vector<1x512xf32> to vector<1xf32>
      %21 = vector.shape_cast %20 : vector<1xf32> to vector<1x1xf32>
      %cst_16 = arith.constant 1.000000e-16 : f32
      %22 = vector.broadcast %cst_16 : f32 to vector<1x1xf32>
      %23 = arith.maximumf %21, %22 : vector<1x1xf32>
      %24 = math.rsqrt %23 : vector<1x1xf32>
      %25 = arith.mulf %18, %24 : vector<1x1xf32>
      %26 = vector.shape_cast %25 : vector<1x1xf32> to vector<1x1x1xf32>
      %27 = vector.shape_cast %26 : vector<1x1x1xf32> to vector<1x1x1xf32>
      %28 = vector.broadcast %27 : vector<1x1x1xf32> to vector<1x1x128xf32>
      %c0_17 = arith.constant 0 : index
      %c0_18 = arith.constant 0 : index
      %c0_19 = arith.constant 0 : index
      %29 = vector.load %arg4[%c0_17, %c0_18, %c0_19] : memref<1x1x128xf32, #tpu.memory_space<vmem>>, vector<1x1x128xf32>
      tpu.vector_store %arg4[%c0_17, %c0_18, %c0_19], %28 {strides = array<i32>} : memref<1x1x128xf32, #tpu.memory_space<vmem>>, vector<1x1x128xf32>,
    } else {
    }
    return
  }
  func.func @transform_0(%arg0: i32, %arg1: i32) -> (i32, i32, i32) {
    %c0_i32 = arith.constant 0 : i32
    %c0_i32_0 = arith.constant 0 : i32
    return %arg0, %arg1, %c0_i32 : i32, i32, i32
  }
  func.func @transform_1(%arg0: i32, %arg1: i32) -> (i32, i32) {
    %c0_i32 = arith.constant 0 : i32
    %c0_i32_0 = arith.constant 0 : i32
    %c0_i32_1 = arith.constant 0 : i32
    return %c0_i32, %c0_i32_0 : i32, i32
  }
  func.func @transform_2(%arg0: i32, %arg1: i32) -> (i32, i32, i32) {
    %c0_i32 = arith.constant 0 : i32
    %c0_i32_0 = arith.constant 0 : i32
    %c0_i32_1 = arith.constant 0 : i32
    return %arg0, %c0_i32, %c0_i32_0 : i32, i32, i32
  }
}

</mosaic_0001>

<llo_original>
// kernel: tpu_custom_call.1
$region0: #{tpu_custom_call.1}
  #allocation0 [shape = 'u32[]', space=smem, size = 0x4, offset = 0x4, fixed_abs, tag = 'smem constant byte address 0x4 - core index']
  #allocation1 [shape = 'u32[72,128]{1,0:T(1,128)}', space=vmem, size = 0x9000, scoped, tag = 'internal scratch']
  #allocation2 [shape = 'f32[1,512]{1,0:T(1,128)}', space=vmem, size = 0x800, scoped, tag = 'scratch operand']
  %s0 = inlined_call_operand.hbm [shape: bf16[2,8,512], index: 0, kind: input, shape index: {}]
  %s1 = inlined_call_operand.hbm [shape: f32[1,512], index: 1, kind: input, shape index: {}]
  %s2 = inlined_call_operand.hbm [shape: f32[2,1,128], index: 2, kind: output, shape index: {}]
  %s3 = sld [smem:[#allocation0]]
  $region57: #{tpu_custom_call.1} parent=0
    _
  %s5 = ssub.s32 1, %s3
  %s6 = scalar_select 0, %s5, %s3
  $region1: #{tpu_custom_call.1} parent=0
    #allocation3 [shape = 'u8[16384]{0}', space=vmem, size = 0x4000, scoped, tag = 'input window, operand 0']
    #allocation4 [shape = 's32[2]{0}', space=sflag, size = 0x8, scoped, tag = 'scoped memory for tpu_custom_call.1']
    #allocation5 [shape = 's32[2]{0}', space=sflag, size = 0x8, scoped, tag = 'scoped memory for tpu_custom_call.1']
    #allocation6 [shape = 'u8[2048]{0}', space=vmem, size = 0x800, scoped, tag = 'input window, operand 1, single buffered']
    #allocation7 [shape = 's32[1]{0}', space=sflag, size = 0x4, scoped, tag = 'scoped memory for tpu_custom_call.1']
    #allocation8 [shape = 'u8[1024]{0}', space=vmem, size = 0x400, scoped, tag = 'output window, operand 0']
    %7 = vsyncpa [#allocation4], 0
    %s8 = scalar_lea.sflag [#allocation4], 1
    %9 = vsyncpa %s8, 0
    %10 = vsyncpa [#allocation7], 0
    %11 = vsyncpa [#allocation5], 0
    %s12 = scalar_lea.sflag [#allocation5], 1
    %13 = vsyncpa %s12, 0
    loop: start=0, step=1, limit=4
    $region2: #{tpu_custom_call.1} parent=1 // loop_pre_header
      _
    $region3: #{tpu_custom_call.1} parent=1 // loop_header
      %s15 = sphi 0, %s19
      %p16 = scmp.ge.s32.totalorder %s15, 4
      %s22 = sphi 0, %s34
      %s23 = sphi 0, %s30
      %s24 = sphi 0, %s22
      %s25 = sphi 0, %s23
      %s26 = sphi 0, %s24
      %s27 = sphi 0, %s25
      %s39 = sphi 0, %s41
      %s42 = sphi 0, %s39
      %s43 = sphi 0, %s42
      %s59 = sphi 0, %s43
      %s63 = sphi 0, %s63
      %s65 = sphi 0, %s63
      %s66 = sphi 0, %s65
      %s80 = sphi 0, %s66
      %s86 = sphi 0, %s88
      %s89 = sphi 0, %s86
      %s90 = sphi 0, %s89
      %s106 = sphi 0, %s90
    $region4: #{tpu_custom_call.1} parent=1 // loop_header_branch
      %18 = sbr.rel (%p16) target = $region8
    $region5: #{tpu_custom_call.1} parent=1 // loop_body
      %s20 = ssub.s32 %s15, 1
      %s21 = ssub.s32 %s15, 2
      %s28 = sadd.s32 1, %s23
      %p29 = scmp.ge.s32.totalorder %s28, 1
      %s30 = scalar_select %p29, 0, %s28
      %s31 = sadd.s32 1, %s22
      %s32 = scalar_select %p29, %s31, %s22
      %p33 = scmp.ge.s32.totalorder %s32, 2
      %s34 = scalar_select %p33, 0, %s32
      %s35 = ssub.s32 %s22, %s34
      %s36 = ssub.s32 %s23, %s30
      %s37 = sor.u32 %s35, %s36
      %p38 = scmp.eq.s32.totalorder %s37, 0
      %s40 = sadd.s32 %s39, 1
      %s41 = scalar_select %p38, %s39, %s40
      %p44 = pneg %p38
      %p45 = scmp.eq.s32.totalorder %s15, 1
      %p46 = por %p44, %p45
      %p47 = scmp.ne.s32.totalorder %s39, %s42
      %p48 = scmp.eq.s32.totalorder %s15, 0
      %p49 = por %p47, %p48
      %p50 = scmp.ne.s32.totalorder %s39, %s42
      %p51 = scmp.eq.s32.totalorder %s20, 1
      %p52 = por %p50, %p51
      %p53 = scmp.ne.s32.totalorder %s42, %s43
      %p54 = scmp.eq.s32.totalorder %s20, 0
      %p55 = por %p53, %p54
      %p56 = scmp.ne.s32.totalorder %s42, %s43
      %p57 = scmp.eq.s32.totalorder %s21, 1
      %p58 = por %p56, %p57
      %p60 = scmp.ne.s32.totalorder %s43, %s59
      %p61 = scmp.eq.s32.totalorder %s21, 0
      %p62 = por %p60, %p61
      %s64 = sadd.s32 %s63, 1
      %p67 = scmp.eq.s32.totalorder %s15, 1
      %p68 = scmp.ne.s32.totalorder %s63, %s65
      %p69 = scmp.eq.s32.totalorder %s15, 0
      %p70 = por %p68, %p69
      %p71 = scmp.ne.s32.totalorder %s63, %s65
      %p72 = scmp.eq.s32.totalorder %s20, 1
      %p73 = por %p71, %p72
      %p74 = scmp.ne.s32.totalorder %s65, %s66
      %p75 = scmp.eq.s32.totalorder %s20, 0
      %p76 = por %p74, %p75
      %p77 = scmp.ne.s32.totalorder %s65, %s66
      %p78 = scmp.eq.s32.totalorder %s21, 1
      %p79 = por %p77, %p78
      %p81 = scmp.ne.s32.totalorder %s66, %s80
      %p82 = scmp.eq.s32.totalorder %s21, 0
      %p83 = por %p81, %p82
      %s84 = ssub.s32 %s22, %s34
      %p85 = scmp.eq.s32.totalorder %s84, 0
      %s87 = sadd.s32 %s86, 1
      %s88 = scalar_select %p85, %s86, %s87
      %p91 = pneg %p85
      %p92 = scmp.eq.s32.totalorder %s15, 1
      %p93 = por %p91, %p92
      %p94 = scmp.ne.s32.totalorder %s86, %s89
      %p95 = scmp.eq.s32.totalorder %s15, 0
      %p96 = por %p94, %p95
      %p97 = scmp.ne.s32.totalorder %s86, %s89
      %p98 = scmp.eq.s32.totalorder %s20, 1
      %p99 = por %p97, %p98
      %p100 = scmp.ne.s32.totalorder %s89, %s90
      %p101 = scmp.eq.s32.totalorder %s20, 0
      %p102 = por %p100, %p101
      %p103 = scmp.ne.s32.totalorder %s89, %s90
      %p104 = scmp.eq.s32.totalorder %s21, 1
      %p105 = por %p103, %p104
      %p107 = scmp.ne.s32.totalorder %s90, %s106
      %p108 = scmp.eq.s32.totalorder %s21, 0
      %p109 = por %p107, %p108
      %p110 = scmp.le.s32.totalorder 1, %s15
      %p111 = scmp.lt.s32.totalorder %s15, 3
      %p112 = pnand %p110, %p111
      %p113 = pneg %p112
      // Predicated region
      $region9: #{tpu_custom_call.1} parent=5 // pred_check
        _
      $region10: #{tpu_custom_call.1} parent=5 // pred_check_branch
        %115 = sbr.rel (%p112) target = $region12
      $region11: #{tpu_custom_call.1} parent=5 // pred_region
        %s116 = ssub.s32 %s15, 1
        // Predicated region
        $region13: #{tpu_custom_call.1} parent=11 // pred_check
          %p117 = pneg %p76
        $region14: #{tpu_custom_call.1} parent=11 // pred_check_branch
          %119 = sbr.rel (%p117) target = $region16
        $region15: #{tpu_custom_call.1} parent=11 // pred_region
          %121 = vsyncadd [#allocation7], 0
          %s123 = sshll.u32 %s1, 4
          %s124 = int_to_ptr.hbm [resolvable:$true] %s123
          %s125 = sshll.u32 [#allocation6], 4
          %s126 = int_to_ptr.vmem [resolvable:$true] %s125
          %128 = dma.hbm_to_vmem [thread:$0]  %s124, 64, %s126, [#allocation7]
        $region16: #{tpu_custom_call.1} parent=11 // pred_fallthru
          _
      $region12: #{tpu_custom_call.1} parent=5 // pred_fallthru
        _
      %p129 = scmp.lt.s32.totalorder %s15, 2
      // Predicated region
      $region17: #{tpu_custom_call.1} parent=5 // pred_check
        %p130 = pneg %p129
      $region18: #{tpu_custom_call.1} parent=5 // pred_check_branch
        %132 = sbr.rel (%p130) target = $region20
      $region19: #{tpu_custom_call.1} parent=5 // pred_region
        // Predicated region
        $region21: #{tpu_custom_call.1} parent=19 // pred_check
          %p133 = pneg %p49
        $region22: #{tpu_custom_call.1} parent=19 // pred_check_branch
          %135 = sbr.rel (%p133) target = $region24
        $region23: #{tpu_custom_call.1} parent=19 // pred_region
          %s136 = sand.u32 %s39, 1
          %s137 = scalar_lea.sflag [#allocation4], %s136
          %s138 = sand.u32 %s39, 1
          %s139 = smul.addr %s138, 16
          %s140 = scalar_lea.vmem [#allocation3], %s139
          %142 = vsyncadd %s137, 0
          %s143 = smul.addr %s23, 4
          %s144 = smul.addr %s22, 4
          %s145 = sadd.s32 %s143, %s144
          %s146 = smul.addr %s145, 4
          %s147 = scalar_lea.hbm %s0, %s146
          %s149 = sshll.u32 %s147, 4
          %s150 = int_to_ptr.hbm [resolvable:$true] %s149
          %s151 = sshll.u32 %s140, 4
          %s152 = int_to_ptr.vmem [resolvable:$true] %s151
          %154 = dma.hbm_to_vmem [thread:$0]  %s150, 256, %s152, %s137
        $region24: #{tpu_custom_call.1} parent=19 // pred_fallthru
          _
      $region20: #{tpu_custom_call.1} parent=5 // pred_fallthru
        _
      %p155 = scmp.le.s32.totalorder 1, %s15
      %p156 = scmp.lt.s32.totalorder %s15, 3
      %p157 = pnand %p155, %p156
      %p158 = pneg %p157
      // Predicated region
      $region25: #{tpu_custom_call.1} parent=5 // pred_check
        _
      $region26: #{tpu_custom_call.1} parent=5 // pred_check_branch
        %160 = sbr.rel (%p157) target = $region28
      $region27: #{tpu_custom_call.1} parent=5 // pred_region
        %s161 = ssub.s32 %s15, 1
        %s162 = sand.u32 %s42, 1
        %s163 = scalar_lea.sflag [#allocation4], %s162
        %s164 = sand.u32 %s42, 1
        %s165 = smul.addr %s164, 16
        %s166 = scalar_lea.vmem [#allocation3], %s165
        // Predicated region
        $region29: #{tpu_custom_call.1} parent=27 // pred_check
          %p167 = pneg %p55
        $region30: #{tpu_custom_call.1} parent=27 // pred_check_branch
          %169 = sbr.rel (%p167) target = $region32
        $region31: #{tpu_custom_call.1} parent=27 // pred_region
          %171 = dma.done %s163, 256
        $region32: #{tpu_custom_call.1} parent=27 // pred_fallthru
          _
        // Predicated region
        $region33: #{tpu_custom_call.1} parent=27 // pred_check
          %p172 = pneg %p76
        $region34: #{tpu_custom_call.1} parent=27 // pred_check_branch
          %174 = sbr.rel (%p172) target = $region36
        $region35: #{tpu_custom_call.1} parent=27 // pred_region
          %176 = dma.done [#allocation7], 64
        $region36: #{tpu_custom_call.1} parent=27 // pred_fallthru
          _
        %s177 = sand.u32 %s42, 1
        %s178 = scalar_lea.sflag [#allocation4], %s177
        %s179 = sand.u32 %s42, 1
        %s180 = smul.addr %s179, 16
        %s181 = scalar_lea.vmem [#allocation3], %s180
        %p182 = pneg %p55
        %p183 = pneg %p52
        %p184 = pneg %p76
        %p185 = pneg %p73
        %p186 = pneg %p102
        %p187 = pneg %p99
        %s188 = sand.u32 %s89, 1
        %s189 = scalar_lea.sflag [#allocation5], %s188
        %s190 = sand.u32 %s89, 1
        %s191 = scalar_lea.vmem [#allocation8], %s190
        %p192 = scmp.eq.s32.totalorder %s25, 0
        // Predicated region
        $region37: #{tpu_custom_call.1} parent=27 // pred_check
          %p193 = pneg %p192
        $region38: #{tpu_custom_call.1} parent=27 // pred_check_branch
          %195 = sbr.rel (%p193) target = $region40
        $region39: #{tpu_custom_call.1} parent=27 // pred_region
          %v196 = vlaneseq
          %vm197 = vcmp.ge.s32.totalorder %v196, 0
          %vm198 = vcmp.lt.s32.totalorder %v196, 512
          %vm199 = vmand %vm197, %vm198
          %200 = vst.msk [vmem:[#allocation2] sm:$0xf] %vm199, 0.0
        $region40: #{tpu_custom_call.1} parent=27 // pred_fallthru
          _
        %v201 = vld [vmem:[#allocation2] sm:$0xf]
        %v202 = vld [vmem:[%s166] sm:$0xff]
        %v203 = vld [vmem:[%s166 + $0x8] sm:$0xff]
        %v204 = vunpack.c.l.bf16 %v202
        %v205 = vunpack.c.h.bf16 %v202
        %v206 = vunpack.c.l.bf16 %v203
        %v207 = vunpack.c.h.bf16 %v203
        %v208 = vrot.slane %v204, 4
        %v209 = vadd.f32 %v204, %v208
        %v210 = vrot.slane %v209, 2
        %v211 = vadd.f32 %v209, %v210
        %v212 = vrot.slane %v211, 1
        %v213 = vadd.f32 %v211, %v212
        %v214 = vrot.slane %v205, 4
        %v215 = vadd.f32 %v205, %v214
        %v216 = vrot.slane %v215, 2
        %v217 = vadd.f32 %v215, %v216
        %v218 = vrot.slane %v217, 1
        %v219 = vadd.f32 %v217, %v218
        %v220 = vrot.slane %v206, 4
        %v221 = vadd.f32 %v206, %v220
        %v222 = vrot.slane %v221, 2
        %v223 = vadd.f32 %v221, %v222
        %v224 = vrot.slane %v223, 1
        %v225 = vadd.f32 %v223, %v224
        %v226 = vrot.slane %v207, 4
        %v227 = vadd.f32 %v207, %v226
        %v228 = vrot.slane %v227, 2
        %v229 = vadd.f32 %v227, %v228
        %v230 = vrot.slane %v229, 1
        %v231 = vadd.f32 %v229, %v230
        %v236 = vrot.slane %v219, 7
        %v237 = vrot.slane %v225, 6
        %v238 = vrot.slane %v231, 5
        %vm239 = vcmask 1040384
        %v240 = vsel %vm239, %v213, %v236
        %vm241 = vcmask 1042434
        %v242 = vsel %vm241, %v237, %v238
        %vm243 = vcmask 1041408
        %v244 = vsel %vm243, %v240, %v242
        %v246 = vadd.f32 %v201, %v244
        %v247 = vlaneseq
        %vm248 = vcmp.ge.s32.totalorder %v247, 0
        %vm249 = vcmp.lt.s32.totalorder %v247, 512
        %vm250 = vmand %vm248, %vm249
        %251 = vst.msk [vmem:[#allocation2] sm:$0xf] %vm250, %v246
        // Predicated region
        $region41: #{tpu_custom_call.1} parent=27 // pred_check
          %p252 = pneg %p192
        $region42: #{tpu_custom_call.1} parent=27 // pred_check_branch
          %254 = sbr.rel (%p252) target = $region44
        $region43: #{tpu_custom_call.1} parent=27 // pred_region
          %v255 = vld [vmem:[#allocation2] sm:$0xf]
          %v256 = vmul.f32 %v255, 0.125
          %v257 = vld [vmem:[#allocation6] sm:$0xf]
          %v258 = vmul.f32 %v256, %v257
          %v260 = vperm.slane %v258, 0
          %v261 = vperm.slane %v258, 1
          %v262 = vperm.slane %v258, 2
          %v263 = vperm.slane %v258, 3
          %v268 = vsel %vm239, %v260, 0.0
          %v269 = vsel %vm239, %v261, 0.0
          %v270 = vadd.f32 %v268, %v269
          %v271 = vsel %vm239, %v262, 0.0
          %v272 = vadd.f32 %v270, %v271
          %v273 = vsel %vm239, %v263, 0.0
          %v274 = vadd.f32 %v272, %v273
          %275 = vadd.xlane.f32.xlu0 %v274
          %v276 = vpop.xlane.xlu0 %275
          %v277 = vmul.f32 %v256, %v256
          %v279 = vperm.slane %v277, 0
          %v280 = vperm.slane %v277, 1
          %v281 = vperm.slane %v277, 2
          %v282 = vperm.slane %v277, 3
          %v287 = vsel %vm239, %v279, 0.0
          %v288 = vsel %vm239, %v280, 0.0
          %v289 = vadd.f32 %v287, %v288
          %v290 = vsel %vm239, %v281, 0.0
          %v291 = vadd.f32 %v289, %v290
          %v292 = vsel %vm239, %v282, 0.0
          %v293 = vadd.f32 %v291, %v292
          %294 = vadd.xlane.f32.xlu0 %v293
          %v295 = vpop.xlane.xlu0 %294
          %v296 = vmax.f32 %v295, 1e-16
          %v297 = vrsqrt.pop %v296
          %v298 = vmul.f32 %v297, %v296
          %v299 = vmul.f32 %v298, %v297
          %v300 = vmul.f32 0.5, %v299
          %v301 = vsub.f32 1.5, %v300
          %v302 = vmul.f32 %v297, %v301
          %vm303 = vweird.f32 %v296
          %vm304 = vweird.f32 %v297
          %vm305 = vmor %vm303, %vm304
          %v306 = vsel %vm305, %v297, %v302
          %v307 = vmul.f32 %v276, %v306
          %308 = vst [vmem:[%s191] sm:$0x1] %v307
        $region44: #{tpu_custom_call.1} parent=27 // pred_fallthru
          _
        %s309 = sand.u32 %s89, 1
        %s310 = scalar_lea.sflag [#allocation5], %s309
        %s311 = sand.u32 %s89, 1
        %s312 = scalar_lea.vmem [#allocation8], %s311
        // Predicated region
        $region45: #{tpu_custom_call.1} parent=27 // pred_check
          %p313 = pneg %p99
        $region46: #{tpu_custom_call.1} parent=27 // pred_check_branch
          %315 = sbr.rel (%p313) target = $region48
        $region47: #{tpu_custom_call.1} parent=27 // pred_region
          %317 = vsyncadd %s310, 0
          %s318 = scalar_lea.hbm %s2, %s24
          %s320 = sshll.u32 %s312, 4
          %s321 = int_to_ptr.vmem [resolvable:$true] %s320
          %s322 = sshll.u32 %s318, 4
          %s323 = int_to_ptr.hbm [resolvable:$true] %s322
          %325 = dma.vmem_to_hbm [thread:$0]  %s321, 16, %s323, %s310
        $region48: #{tpu_custom_call.1} parent=27 // pred_fallthru
          _
      $region28: #{tpu_custom_call.1} parent=5 // pred_fallthru
        _
      %p326 = scmp.le.s32.totalorder 2, %s15
      // Predicated region
      $region49: #{tpu_custom_call.1} parent=5 // pred_check
        %p327 = pneg %p326
      $region50: #{tpu_custom_call.1} parent=5 // pred_check_branch
        %329 = sbr.rel (%p327) target = $region52
      $region51: #{tpu_custom_call.1} parent=5 // pred_region
        %s330 = ssub.s32 %s15, 2
        // Predicated region
        $region53: #{tpu_custom_call.1} parent=51 // pred_check
          %p331 = pneg %p105
        $region54: #{tpu_custom_call.1} parent=51 // pred_check_branch
          %333 = sbr.rel (%p331) target = $region56
        $region55: #{tpu_custom_call.1} parent=51 // pred_region
          %s334 = sand.u32 %s90, 1
          %s335 = scalar_lea.sflag [#allocation5], %s334
          %s336 = sand.u32 %s90, 1
          %s337 = scalar_lea.vmem [#allocation8], %s336
          %339 = dma.done %s335, 16
        $region56: #{tpu_custom_call.1} parent=51 // pred_fallthru
          _
      $region52: #{tpu_custom_call.1} parent=5 // pred_fallthru
        _
    $region6: #{tpu_custom_call.1} parent=1 // loop_footer
      %s19 = sadd.s32 1, %s15
    $region7: #{tpu_custom_call.1} parent=1 // loop_footer_branch
      %14 = sbr.rel target = $region3
    $region8: #{tpu_custom_call.1} parent=1 // loop_exit
      _
    %340 = vsyncpa [#allocation4], 1
    %s341 = scalar_lea.sflag [#allocation4], 1
    %342 = vsyncpa %s341, 1
    %343 = vsyncpa [#allocation7], 1
    %344 = vsyncpa [#allocation5], 1
    %s345 = scalar_lea.sflag [#allocation5], 1
    %346 = vsyncpa %s345, 1

</llo_original>
